<compile_context>
chip_gen: v7x
topology: tpu7x:2x2x1
jax: 0.10.0
libtpu: 0.0.40
codegen_flags: <defaults>
</compile_context>

<pallas_src>
import jax
import jax.numpy as jnp
from jax.experimental import pallas as pl

# ---------------- problem sizes (small, consistent with the module) ----------------
B, C_IN, H, W = 2, 3, 16, 16          # batch of RGB images
NA, NC = 3, 2                          # anchors per cell, classes
NO = 5 + NC                            # x, y, w, h, obj, cls...
DH = NA * NO                           # head channels per cell = 21
C1 = 32                                # backbone hidden channels
KP = 3 * 3 * C_IN                      # im2col patch length = 27
N_CELLS = B * H * W                    # 512 grid cells (4 x 128 lanes)
STRIDE = 8.0                           # detection-scale stride (synthetic)
DROP_P = 0.2
KEEP_SCALE = 1.0 / (1.0 - DROP_P)
DROP_THRESH = int(DROP_P * (1 << 31))  # threshold for 31-bit uniform ints


# ---------------------------------- Pallas kernel ----------------------------------
def _detect_kernel(pt_ref,          # (KP, N_CELLS) bf16   im2col patches, transposed
                   w1_ref, b1_ref,  # (C1, KP) bf16, (C1, 1) f32
                   w2_ref,          # (DH, C1) bf16
                   cst_ref,         # (3, DH, 1) f32: [head bias, anchor lane, entry code]
                   goff_ref,        # (DH, N_CELLS) f32: per-channel grid offset (gx/gy/0)
                   bits_ref,        # (DH, N_CELLS) i32: 31-bit uniform dropout randoms
                   o_ref):          # (DH, N_CELLS) f32
    # ---- backbone 3x3 conv as matmul over im2col patches + SiLU ----
    h1 = jnp.dot(w1_ref[...], pt_ref[...], preferred_element_type=jnp.float32)
    h1 = h1 + b1_ref[...]
    h1 = h1 * jax.nn.sigmoid(h1)                                   # SiLU

    # ---- 1x1 detection head (bf16 MXU, f32 accum) ----
    z = jnp.dot(w2_ref[...], h1.astype(jnp.bfloat16),
                preferred_element_type=jnp.float32)
    b2 = cst_ref[0]                                                # (DH, 1)
    anchor = cst_ref[1]                                            # aw/ah/0 per channel
    code = cst_ref[2]                                              # 0=xy, 1=wh, 2=rest
    y = jax.nn.sigmoid(z + b2)                                     # YOLO sigmoids everything

    # ---- YOLO box decode (two selects, precomputed per-channel constants) ----
    y2 = y + y
    xy_dec = (y2 - 0.5 + goff_ref[...]) * STRIDE
    wh_dec = (y2 * y2) * anchor
    dec = jnp.where(code < 0.5, xy_dec, jnp.where(code < 1.5, wh_dec, y))

    # ---- Dropout(p=0.2), integer keep-test, inverted scaling folded into select ----
    keep = jnp.where(bits_ref[...] >= DROP_THRESH, KEEP_SCALE, 0.0)
    o_ref[...] = dec * keep


# --------------------------------- JAX-side wrapper ---------------------------------
def _im2col_3x3(x_nhwc):
    """3x3 same-padded patches, channel-last within each (kh, kw) tap."""
    xp = jnp.pad(x_nhwc, ((0, 0), (1, 1), (1, 1), (0, 0)))
    taps = [xp[:, kh:kh + H, kw:kw + W, :] for kh in range(3) for kw in range(3)]
    return jnp.concatenate(taps, axis=-1)                          # (B, H, W, 9*C_IN)


@jax.jit
def lesion_detection_forward(images_nchw, params, drop_bits):
    """images_nchw: [B, 3, H, W] f32 -> predictions [B, H*W*NA, NO]."""
    w1t, b1, w2t, cst, goff = params

    x = jnp.transpose(images_nchw, (0, 2, 3, 1))                   # NCHW -> NHWC (glue)
    patches = _im2col_3x3(x).reshape(N_CELLS, KP)
    pt = patches.T.astype(jnp.bfloat16)                            # cells on lane axis

    raw = pl.pallas_call(
        _detect_kernel,
        out_shape=jax.ShapeDtypeStruct((DH, N_CELLS), jnp.float32),
        grid=(1,),                                                  # single step: whole
        in_specs=[                                                  # problem fits VMEM
            pl.BlockSpec((KP, N_CELLS), lambda i: (0, 0)),
            pl.BlockSpec((C1, KP),      lambda i: (0, 0)),
            pl.BlockSpec((C1, 1),       lambda i: (0, 0)),
            pl.BlockSpec((DH, C1),      lambda i: (0, 0)),
            pl.BlockSpec((3, DH, 1),    lambda i: (0, 0, 0)),
            pl.BlockSpec((DH, N_CELLS), lambda i: (0, 0)),
            pl.BlockSpec((DH, N_CELLS), lambda i: (0, 0)),
        ],
        out_specs=pl.BlockSpec((DH, N_CELLS), lambda i: (0, 0)),
    )(pt, w1t, b1, w2t, cst, goff, drop_bits)

    # (DH, N_CELLS) -> (B, H*W*NA, NO): standard YOLO prediction tensor shape.
    return raw.T.reshape(B, H * W, NA, NO).reshape(B, H * W * NA, NO)


def init_params(key):
    k1, k2, k3, k4 = jax.random.split(key, 4)
    w1 = (jax.random.normal(k1, (3, 3, C_IN, C1), jnp.float32) * 0.1).reshape(KP, C1)
    b1 = (jax.random.normal(k2, (C1,), jnp.float32) * 0.01).reshape(C1, 1)
    w2 = jax.random.normal(k3, (C1, DH), jnp.float32) * 0.1
    b2 = jax.random.normal(k4, (DH,), jnp.float32) * 0.01

    # Per-head-channel constants: channel c = (anchor a, entry e), e in (x,y,w,h,obj,cls..)
    entry = jnp.arange(DH) % NO
    anchor_idx = jnp.arange(DH) // NO
    anchors = jnp.array([[10.0, 13.0], [16.0, 30.0], [33.0, 23.0]], jnp.float32)
    anchor_c = jnp.where(entry == 2, anchors[anchor_idx, 0],
               jnp.where(entry == 3, anchors[anchor_idx, 1], 0.0))
    code = jnp.where(entry < 2, 0.0, jnp.where(entry < 4, 1.0, 2.0))
    cst = jnp.stack([b2, anchor_c, code], axis=0).reshape(3, DH, 1).astype(jnp.float32)

    # Per-(channel, cell) grid offsets precomputed once: gx for x-entries, gy for y-entries.
    cell = jnp.arange(N_CELLS)
    rem = cell % (H * W)
    gy = (rem // W).astype(jnp.float32)
    gx = (rem % W).astype(jnp.float32)
    goff = jnp.where((entry == 0)[:, None], gx[None, :],
            jnp.where((entry == 1)[:, None], gy[None, :], 0.0)).astype(jnp.float32)

    w1t = w1.T.astype(jnp.bfloat16)                                 # (C1, KP)
    w2t = w2.T.astype(jnp.bfloat16)                                 # (DH, C1)
    return (w1t, b1, w2t, cst, goff)


if __name__ == "__main__":
    key = jax.random.PRNGKey(0)
    k_img, k_par, k_drop = jax.random.split(key, 3)
    images = jax.random.normal(k_img, (B, C_IN, H, W), jnp.float32)   # NCHW like PyTorch
    params = init_params(k_par)

    # Dropout randomness: 31-bit uniform ints; keep-test done in-kernel in integer space.
    # TODO(synk): nn.Dropout(0.2) is identity in eval(); this reproduces train-mode forward.
    drop_bits = (jax.random.bits(k_drop, (DH, N_CELLS), jnp.uint32) >> 1).astype(jnp.int32)

    preds = lesion_detection_forward(images, params, drop_bits)
    jax.block_until_ready(preds)
    assert preds.shape == (B, H * W * NA, NO)
    assert bool(jnp.all(jnp.isfinite(preds)))
    print("KERNEL_OK")
</pallas_src>

<mosaic_0001>
module attributes {stable_mosaic.version = 11 : i64} {
  func.func @_detect_kernel(%arg0: i32, %arg1: memref<27x512xbf16, #tpu.memory_space<vmem>>, %arg2: memref<32x27xbf16, #tpu.memory_space<vmem>>, %arg3: memref<32x1xf32, #tpu.memory_space<vmem>>, %arg4: memref<21x32xbf16, #tpu.memory_space<vmem>>, %arg5: memref<3x21x1xf32, #tpu.memory_space<vmem>>, %arg6: memref<21x512xf32, #tpu.memory_space<vmem>>, %arg7: memref<21x512xi32, #tpu.memory_space<vmem>>, %arg8: memref<21x512xf32, #tpu.memory_space<vmem>>) attributes {dimension_semantics = [#tpu.dimension_semantics<arbitrary>], iteration_bounds = array<i64: 1>, scalar_prefetch = 0 : i64, scratch_operands = 0 : i64, tpu.core_type = #tpu.core_type<tc>, window_params = [{pipeline_mode = #tpu.pipeline_mode<synchronous>, transform_indices = @transform_0, window_bounds = array<i64: 27, 512>}, {pipeline_mode = #tpu.pipeline_mode<synchronous>, transform_indices = @transform_1, window_bounds = array<i64: 32, 27>}, {pipeline_mode = #tpu.pipeline_mode<synchronous>, transform_indices = @transform_2, window_bounds = array<i64: 32, 1>}, {pipeline_mode = #tpu.pipeline_mode<synchronous>, transform_indices = @transform_3, window_bounds = array<i64: 21, 32>}, {pipeline_mode = #tpu.pipeline_mode<synchronous>, transform_indices = @transform_4, window_bounds = array<i64: 3, 21, 1>}, {pipeline_mode = #tpu.pipeline_mode<synchronous>, transform_indices = @transform_5, window_bounds = array<i64: 21, 512>}, {pipeline_mode = #tpu.pipeline_mode<synchronous>, transform_indices = @transform_6, window_bounds = array<i64: 21, 512>}, {pipeline_mode = #tpu.pipeline_mode<synchronous>, transform_indices = @transform_7, window_bounds = array<i64: 21, 512>}]} {
    %c0 = arith.constant 0 : index
    %c0_0 = arith.constant 0 : index
    %0 = vector.load %arg2[%c0, %c0_0] : memref<32x27xbf16, #tpu.memory_space<vmem>>, vector<32x27xbf16>
    %c0_1 = arith.constant 0 : index
    %c0_2 = arith.constant 0 : index
    %1 = vector.load %arg1[%c0_1, %c0_2] : memref<27x512xbf16, #tpu.memory_space<vmem>>, vector<27x512xbf16>
    %cst = arith.constant dense<0.000000e+00> : vector<32x512xf32>
    %2 = tpu.matmul %0, %1, %cst {dimension_numbers = #tpu.dot_dimension_numbers<[1], [0], [0], [1], [0, 0, 1, 1], [], []>} : vector<32x27xbf16>, vector<27x512xbf16>, vector<32x512xf32> -> vector<32x512xf32>
    %c0_3 = arith.constant 0 : index
    %c0_4 = arith.constant 0 : index
    %3 = vector.load %arg3[%c0_3, %c0_4] : memref<32x1xf32, #tpu.memory_space<vmem>>, vector<32x1xf32>
    %4 = vector.broadcast %3 : vector<32x1xf32> to vector<32x512xf32>
    %5 = arith.addf %2, %4 : vector<32x512xf32>
    %6 = arith.negf %5 : vector<32x512xf32>
    %7 = math.exp %6 : vector<32x512xf32>
    %cst_5 = arith.constant 1.000000e+00 : f32
    %8 = vector.broadcast %cst_5 : f32 to vector<32x512xf32>
    %9 = arith.addf %8, %7 : vector<32x512xf32>
    %10 = arith.divf %8, %9 : vector<32x512xf32>
    %11 = arith.mulf %5, %10 : vector<32x512xf32>
    %c0_6 = arith.constant 0 : index
    %c0_7 = arith.constant 0 : index
    %12 = vector.load %arg4[%c0_6, %c0_7] : memref<21x32xbf16, #tpu.memory_space<vmem>>, vector<21x32xbf16>
    %13 = arith.truncf %11 : vector<32x512xf32> to vector<32x512xbf16>
    %cst_8 = arith.constant dense<0.000000e+00> : vector<21x512xf32>
    %14 = tpu.matmul %12, %13, %cst_8 {dimension_numbers = #tpu.dot_dimension_numbers<[1], [0], [0], [1], [0, 0, 1, 1], [], []>} : vector<21x32xbf16>, vector<32x512xbf16>, vector<21x512xf32> -> vector<21x512xf32>
    %c0_9 = arith.constant 0 : index
    %c0_10 = arith.constant 0 : index
    %c0_11 = arith.constant 0 : index
    %15 = vector.load %arg5[%c0_9, %c0_10, %c0_11] : memref<3x21x1xf32, #tpu.memory_space<vmem>>, vector<1x21x1xf32>
    %16 = vector.shape_cast %15 : vector<1x21x1xf32> to vector<21x1xf32>
    %c1 = arith.constant 1 : index
    %c0_12 = arith.constant 0 : index
    %c0_13 = arith.constant 0 : index
    %17 = vector.load %arg5[%c1, %c0_12, %c0_13] : memref<3x21x1xf32, #tpu.memory_space<vmem>>, vector<1x21x1xf32>
    %18 = vector.shape_cast %17 : vector<1x21x1xf32> to vector<21x1xf32>
    %c2 = arith.constant 2 : index
    %c0_14 = arith.constant 0 : index
    %c0_15 = arith.constant 0 : index
    %19 = vector.load %arg5[%c2, %c0_14, %c0_15] : memref<3x21x1xf32, #tpu.memory_space<vmem>>, vector<1x21x1xf32>
    %20 = vector.shape_cast %19 : vector<1x21x1xf32> to vector<21x1xf32>
    %21 = vector.broadcast %16 : vector<21x1xf32> to vector<21x512xf32>
    %22 = arith.addf %14, %21 : vector<21x512xf32>
    %23 = arith.negf %22 : vector<21x512xf32>
    %24 = math.exp %23 : vector<21x512xf32>
    %cst_16 = arith.constant 1.000000e+00 : f32
    %25 = vector.broadcast %cst_16 : f32 to vector<21x512xf32>
    %26 = arith.addf %25, %24 : vector<21x512xf32>
    %27 = arith.divf %25, %26 : vector<21x512xf32>
    %28 = arith.addf %27, %27 : vector<21x512xf32>
    %cst_17 = arith.constant 5.000000e-01 : f32
    %29 = vector.broadcast %cst_17 : f32 to vector<21x512xf32>
    %30 = arith.subf %28, %29 : vector<21x512xf32>
    %c0_18 = arith.constant 0 : index
    %c0_19 = arith.constant 0 : index
    %31 = vector.load %arg6[%c0_18, %c0_19] : memref<21x512xf32, #tpu.memory_space<vmem>>, vector<21x512xf32>
    %32 = arith.addf %30, %31 : vector<21x512xf32>
    %cst_20 = arith.constant 8.000000e+00 : f32
    %33 = vector.broadcast %cst_20 : f32 to vector<21x512xf32>
    %34 = arith.mulf %32, %33 : vector<21x512xf32>
    %35 = arith.mulf %28, %28 : vector<21x512xf32>
    %36 = vector.broadcast %18 : vector<21x1xf32> to vector<21x512xf32>
    %37 = arith.mulf %35, %36 : vector<21x512xf32>
    %cst_21 = arith.constant 5.000000e-01 : f32
    %38 = vector.broadcast %cst_21 : f32 to vector<21x1xf32>
    %39 = arith.cmpf olt, %20, %38 : vector<21x1xf32>
    %cst_22 = arith.constant 1.500000e+00 : f32
    %40 = vector.broadcast %cst_22 : f32 to vector<21x1xf32>
    %41 = arith.cmpf olt, %20, %40 : vector<21x1xf32>
    %42 = vector.shape_cast %41 : vector<21x1xi1> to vector<21x1xi1>
    %43 = vector.broadcast %42 : vector<21x1xi1> to vector<21x512xi1>
    %44 = arith.select %43, %37, %27 : vector<21x512xi1>, vector<21x512xf32>
    %45 = vector.shape_cast %39 : vector<21x1xi1> to vector<21x1xi1>
    %46 = vector.broadcast %45 : vector<21x1xi1> to vector<21x512xi1>
    %47 = arith.select %46, %34, %44 : vector<21x512xi1>, vector<21x512xf32>
    %c0_23 = arith.constant 0 : index
    %c0_24 = arith.constant 0 : index
    %48 = vector.load %arg7[%c0_23, %c0_24] : memref<21x512xi32, #tpu.memory_space<vmem>>, vector<21x512xi32>
    %c429496729_i32 = arith.constant 429496729 : i32
    %49 = vector.broadcast %c429496729_i32 : i32 to vector<21x512xi32>
    %50 = arith.cmpi sge, %48, %49 : vector<21x512xi32>
    %cst_25 = arith.constant 1.250000e+00 : f32
    %cst_26 = arith.constant 0.000000e+00 : f32
    %51 = vector.broadcast %cst_25 : f32 to vector<21x512xf32>
    %52 = vector.broadcast %cst_26 : f32 to vector<21x512xf32>
    %53 = arith.select %50, %51, %52 : vector<21x512xi1>, vector<21x512xf32>
    %54 = arith.mulf %47, %53 : vector<21x512xf32>
    %c0_27 = arith.constant 0 : index
    %c0_28 = arith.constant 0 : index
    %55 = vector.load %arg8[%c0_27, %c0_28] : memref<21x512xf32, #tpu.memory_space<vmem>>, vector<21x512xf32>
    tpu.vector_store %arg8[%c0_27, %c0_28], %54 {strides = array<i32>} : memref<21x512xf32, #tpu.memory_space<vmem>>, vector<21x512xf32>,
    return
  }
  func.func @transform_0(%arg0: i32) -> (i32, i32) {
    %c0_i32 = arith.constant 0 : i32
    %c0_i32_0 = arith.constant 0 : i32
    %c0_i32_1 = arith.constant 0 : i32
    return %c0_i32, %c0_i32_0 : i32, i32
  }
  func.func @transform_1(%arg0: i32) -> (i32, i32) {
    %c0_i32 = arith.constant 0 : i32
    %c0_i32_0 = arith.constant 0 : i32
    %c0_i32_1 = arith.constant 0 : i32
    return %c0_i32, %c0_i32_0 : i32, i32
  }
  func.func @transform_2(%arg0: i32) -> (i32, i32) {
    %c0_i32 = arith.constant 0 : i32
    %c0_i32_0 = arith.constant 0 : i32
    %c0_i32_1 = arith.constant 0 : i32
    return %c0_i32, %c0_i32_0 : i32, i32
  }
  func.func @transform_3(%arg0: i32) -> (i32, i32) {
    %c0_i32 = arith.constant 0 : i32
    %c0_i32_0 = arith.constant 0 : i32
    %c0_i32_1 = arith.constant 0 : i32
    return %c0_i32, %c0_i32_0 : i32, i32
  }
  func.func @transform_4(%arg0: i32) -> (i32, i32, i32) {
    %c0_i32 = arith.constant 0 : i32
    %c0_i32_0 = arith.constant 0 : i32
    %c0_i32_1 = arith.constant 0 : i32
    %c0_i32_2 = arith.constant 0 : i32
    return %c0_i32, %c0_i32_0, %c0_i32_1 : i32, i32, i32
  }
  func.func @transform_5(%arg0: i32) -> (i32, i32) {
    %c0_i32 = arith.constant 0 : i32
    %c0_i32_0 = arith.constant 0 : i32
    %c0_i32_1 = arith.constant 0 : i32
    return %c0_i32, %c0_i32_0 : i32, i32
  }
  func.func @transform_6(%arg0: i32) -> (i32, i32) {
    %c0_i32 = arith.constant 0 : i32
    %c0_i32_0 = arith.constant 0 : i32
    %c0_i32_1 = arith.constant 0 : i32
    return %c0_i32, %c0_i32_0 : i32, i32
  }
  func.func @transform_7(%arg0: i32) -> (i32, i32) {
    %c0_i32 = arith.constant 0 : i32
    %c0_i32_0 = arith.constant 0 : i32
    %c0_i32_1 = arith.constant 0 : i32
    return %c0_i32, %c0_i32_0 : i32, i32
  }
}

</mosaic_0001>

<llo_original>
// kernel: lesion_detection_forward.1
$region0: #{lesion_detection_forward.1}
  #allocation0 [shape = 'u32[]', space=smem, size = 0x4, offset = 0x4, fixed_abs, tag = 'smem constant byte address 0x4 - core index']
  #allocation1 [shape = 'u32[144,128]{1,0:T(1,128)}', space=vmem, size = 0x12000, scoped, tag = 'internal scratch']
  %s0 = inlined_call_operand.vmem [shape: bf16[27,512], index: 0, kind: input, shape index: {}]
  %s1 = inlined_call_operand.vmem [shape: bf16[32,27], index: 1, kind: input, shape index: {}]
  %s2 = inlined_call_operand.vmem [shape: f32[32,1], index: 2, kind: input, shape index: {}]
  %s3 = inlined_call_operand.vmem [shape: bf16[21,32], index: 3, kind: input, shape index: {}]
  %s4 = inlined_call_operand.vmem [shape: f32[3,21,1], index: 4, kind: input, shape index: {}]
  %s5 = inlined_call_operand.vmem [shape: f32[21,512], index: 5, kind: input, shape index: {}]
  %s6 = inlined_call_operand.vmem [shape: s32[21,512], index: 6, kind: input, shape index: {}]
  %s7 = inlined_call_operand.vmem [shape: f32[21,512], index: 7, kind: output, shape index: {}]
  %s8 = sld [smem:[#allocation0]]
  $region38: #{lesion_detection_forward.1} parent=0
    _
  %s10 = ssub.s32 1, %s8
  %s11 = scalar_select 0, %s10, %s8
  // Predicated region
  $region2: #{lesion_detection_forward.1} parent=0 // pred_check
    _
  $region3: #{lesion_detection_forward.1} parent=0 // pred_check_branch
    %13 = sbr.rel (0) target = $region5
  $region4: #{lesion_detection_forward.1} parent=0 // pred_region
    _
  $region5: #{lesion_detection_forward.1} parent=0 // pred_fallthru
    _
  // Predicated region
  $region6: #{lesion_detection_forward.1} parent=0 // pred_check
    _
  $region7: #{lesion_detection_forward.1} parent=0 // pred_check_branch
    %15 = sbr.rel (0) target = $region9
  $region8: #{lesion_detection_forward.1} parent=0 // pred_region
    _
  $region9: #{lesion_detection_forward.1} parent=0 // pred_fallthru
    _
  // Predicated region
  $region10: #{lesion_detection_forward.1} parent=0 // pred_check
    _
  $region11: #{lesion_detection_forward.1} parent=0 // pred_check_branch
    %17 = sbr.rel (0) target = $region13
  $region12: #{lesion_detection_forward.1} parent=0 // pred_region
    _
  $region13: #{lesion_detection_forward.1} parent=0 // pred_fallthru
    _
  // Predicated region
  $region14: #{lesion_detection_forward.1} parent=0 // pred_check
    _
  $region15: #{lesion_detection_forward.1} parent=0 // pred_check_branch
    %19 = sbr.rel (0) target = $region17
  $region16: #{lesion_detection_forward.1} parent=0 // pred_region
    _
  $region17: #{lesion_detection_forward.1} parent=0 // pred_fallthru
    _
  // Predicated region
  $region18: #{lesion_detection_forward.1} parent=0 // pred_check
    _
  $region19: #{lesion_detection_forward.1} parent=0 // pred_check_branch
    %21 = sbr.rel (0) target = $region21
  $region20: #{lesion_detection_forward.1} parent=0 // pred_region
    _
  $region21: #{lesion_detection_forward.1} parent=0 // pred_fallthru
    _
  // Predicated region
  $region22: #{lesion_detection_forward.1} parent=0 // pred_check
    _
  $region23: #{lesion_detection_forward.1} parent=0 // pred_check_branch
    %23 = sbr.rel (0) target = $region25
  $region24: #{lesion_detection_forward.1} parent=0 // pred_region
    _
  $region25: #{lesion_detection_forward.1} parent=0 // pred_fallthru
    _
  // Predicated region
  $region26: #{lesion_detection_forward.1} parent=0 // pred_check
    _
  $region27: #{lesion_detection_forward.1} parent=0 // pred_check_branch
    %25 = sbr.rel (0) target = $region29
  $region28: #{lesion_detection_forward.1} parent=0 // pred_region
    _
  $region29: #{lesion_detection_forward.1} parent=0 // pred_fallthru
    _
  %v27 = vld [vmem:[%s1] sm:$0xf]
  %v28 = vld [vmem:[%s1 + $0x4] sm:$0xf]
  %v29 = vld [vmem:[%s1 + $0x8] sm:$0xf]
  %v30 = vld [vmem:[%s1 + $0xc] sm:$0xf]
  %v31 = vld [vmem:[%s0] sm:$0xff]
  %v32 = vld [vmem:[%s0 + $0x8] sm:$0xff]
  %v33 = vld [vmem:[%s0 + $0x10] sm:$0xff]
  %v34 = vld [vmem:[%s0 + $0x18] sm:$0xff]
  %v35 = vld [vmem:[%s0 + $0x20] sm:$0xff]
  %v36 = vld [vmem:[%s0 + $0x28] sm:$0xff]
  %v37 = vld [vmem:[%s0 + $0x30] sm:$0x33]
  %v38 = vld [vmem:[%s0 + $0x38] sm:$0x33]
  %v39 = vld [vmem:[%s2] sm:$0xff]
  %v40 = vld [vmem:[%s2 + $0x8] sm:$0xff]
  %v41 = vld [vmem:[%s2 + $0x10] sm:$0xff]
  %v42 = vld [vmem:[%s2 + $0x18] sm:$0xff]
  %44 = vset.pattern.permute.xlu0 0
  %45 = vperm.xlu0 %44, %v39
  %v46 = vpop.permute.xlu0 %45
  %49 = vset.pattern.permute.xlu0 0
  %50 = vperm.xlu0 %49, %v40
  %v51 = vpop.permute.xlu0 %50
  %54 = vset.pattern.permute.xlu0 0
  %55 = vperm.xlu0 %54, %v41
  %v56 = vpop.permute.xlu0 %55
  %59 = vset.pattern.permute.xlu0 0
  %60 = vperm.xlu0 %59, %v42
  %v61 = vpop.permute.xlu0 %60
  %v67 = vunpack.c.l.b16 %v27
  %v68 = vunpack.c.l.b16 %v28
  %v69 = vunpack.c.l.b16 %v29
  %v70 = vunpack.c.l.b16 %v30
  %v71 = vpack.c.b16 %v68, %v67
  %v72 = vpack.c.b16 %v70, %v69
  %v81 = vunpack.c.l.b16 %v31
  %v82 = vunpack.c.h.b16 %v31
  %v83 = vunpack.c.l.b16 %v32
  %v84 = vunpack.c.h.b16 %v32
  %v85 = vunpack.c.l.b16 %v33
  %v86 = vunpack.c.h.b16 %v33
  %v87 = vunpack.c.l.b16 %v34
  %v88 = vunpack.c.h.b16 %v34
  %v89 = vunpack.c.l.b16 %v35
  %v90 = vunpack.c.h.b16 %v35
  %v91 = vunpack.c.l.b16 %v36
  %v92 = vunpack.c.h.b16 %v36
  %v93 = vunpack.c.l.b16 %v37
  %v94 = vunpack.c.h.b16 %v37
  %v95 = vunpack.c.l.b16 %v38
  %v96 = vunpack.c.h.b16 %v38
  %v97 = vpack.c.b16 %v85, %v81
  %v98 = vpack.c.b16 %v86, %v82
  %v99 = vpack.c.b16 %v87, %v83
  %v100 = vpack.c.b16 %v88, %v84
  %v101 = vpack.c.b16 %v93, %v89
  %v102 = vpack.c.b16 %v94, %v90
  %v103 = vpack.c.b16 %v95, %v91
  %v104 = vpack.c.b16 %v96, %v92
  %vm109 = vcmask 220160
  %v111 = vsel %vm109, %v71, 0
  %v114 = vsel %vm109, %v72, 0
  %vm116 = vcmask 1044480
  %vm117 = vcmask 1045504
  %v118 = vsel %vm116, 4294967295, 65535
  %v119 = vsel %vm117, %v118, 0
  %v121 = vand.u32 %v101, %v119
  %v124 = vand.u32 %v102, %v119
  %v127 = vand.u32 %v103, %v119
  %v130 = vand.u32 %v104, %v119
  %132 = vmatprep.subr.bf16.mxu0 %v98
  %133 = vmatpush1.bf16.msra.mxu0 %v97
  %134 = vmatprep.subr.bf16.mxu0 %v124
  %135 = vmatpush1.bf16.msra.mxu0 %v121
  %136 = vmatprep.subr.bf16.mxu0 0
  %137 = vmatpush1.bf16.msra.mxu0 0
  %138 = vmatprep.subr.bf16.mxu0 0
  %139 = vmatpush1.bf16.msra.mxu0 0
  %140 = vmatprep.subr.bf16.mxu0 0
  %141 = vmatpush1.bf16.msra.mxu0 0
  %142 = vmatprep.subr.bf16.mxu0 0
  %143 = vmatpush1.bf16.msra.mxu0 0
  %144 = vmatprep.subr.bf16.mxu0 0
  %145 = vmatpush1.bf16.msra.mxu0 0
  %146 = vmatprep.subr.bf16.mxu0 0
  %147 = vmatpush1.bf16.msra.mxu0 0
  %148 = vmatprep.subr.bf16.mxu0 0
  %149 = vmatpush1.bf16.msra.mxu0 0
  %150 = vmatprep.subr.bf16.mxu0 0
  %151 = vmatpush1.bf16.msra.mxu0 0
  %152 = vmatprep.subr.bf16.mxu0 0
  %153 = vmatpush1.bf16.msra.mxu0 0
  %154 = vmatprep.subr.bf16.mxu0 0
  %155 = vmatpush1.bf16.msra.mxu0 0
  %156 = vmatprep.subr.bf16.mxu0 0
  %157 = vmatpush1.bf16.msra.mxu0 0
  %158 = vmatprep.subr.bf16.mxu0 0
  %159 = vmatpush1.bf16.msra.mxu0 0
  %160 = vmatprep.subr.bf16.mxu0 0
  %161 = vmatpush1.bf16.msra.mxu0 0
  %162 = vmatprep.subr.bf16.mxu0 0
  %163 = vmatpush1.bf16.msra.mxu0 0
  %164 = vmatprep.mubr.bf16.mxu0 0
  %165 = vmatmul.mubr.bf16.gmra.mrb[0].mxu0 %v111
  %v166 = vpop.f32.mrb[0].mxu0
  %v167 = vadd.f32 %v46, %v166
  %v168 = vpop.f32.mrb[0].mxu0
  %v169 = vadd.f32 %v46, %v168
  %v170 = vpop.f32.mrb[0].mxu0
  %v171 = vadd.f32 %v51, %v170
  %v172 = vpop.f32.mrb[0].mxu0
  %v173 = vadd.f32 %v51, %v172
  %174 = vmatprep.mubr.bf16.mxu0 0
  %175 = vmatmul.mubr.bf16.gmra.mrb[0].mxu0 %v114
  %v176 = vpop.f32.mrb[0].mxu0
  %v177 = vadd.f32 %v56, %v176
  %v178 = vpop.f32.mrb[0].mxu0
  %v179 = vadd.f32 %v56, %v178
  %v180 = vpop.f32.mrb[0].mxu0
  %v181 = vadd.f32 %v61, %v180
  %v182 = vpop.f32.mrb[0].mxu0
  %v183 = vadd.f32 %v61, %v182
  %184 = vdwg.mxu0
  %185 = vmatprep.subr.bf16.mxu0 %v100
  %186 = vmatpush1.bf16.msra.mxu0 %v99
  %187 = vmatprep.subr.bf16.mxu0 %v130
  %188 = vmatpush1.bf16.msra.mxu0 %v127
  %189 = vmatprep.subr.bf16.mxu0 0
  %190 = vmatpush1.bf16.msra.mxu0 0
  %191 = vmatprep.subr.bf16.mxu0 0
  %192 = vmatpush1.bf16.msra.mxu0 0
  %193 = vmatprep.subr.bf16.mxu0 0
  %194 = vmatpush1.bf16.msra.mxu0 0
  %195 = vmatprep.subr.bf16.mxu0 0
  %196 = vmatpush1.bf16.msra.mxu0 0
  %197 = vmatprep.subr.bf16.mxu0 0
  %198 = vmatpush1.bf16.msra.mxu0 0
  %199 = vmatprep.subr.bf16.mxu0 0
  %200 = vmatpush1.bf16.msra.mxu0 0
  %201 = vmatprep.subr.bf16.mxu0 0
  %202 = vmatpush1.bf16.msra.mxu0 0
  %203 = vmatprep.subr.bf16.mxu0 0
  %204 = vmatpush1.bf16.msra.mxu0 0
  %205 = vmatprep.subr.bf16.mxu0 0
  %206 = vmatpush1.bf16.msra.mxu0 0
  %207 = vmatprep.subr.bf16.mxu0 0
  %208 = vmatpush1.bf16.msra.mxu0 0
  %209 = vmatprep.subr.bf16.mxu0 0
  %210 = vmatpush1.bf16.msra.mxu0 0
  %211 = vmatprep.subr.bf16.mxu0 0
  %212 = vmatpush1.bf16.msra.mxu0 0
  %213 = vmatprep.subr.bf16.mxu0 0
  %214 = vmatpush1.bf16.msra.mxu0 0
  %215 = vmatprep.subr.bf16.mxu0 0
  %216 = vmatpush1.bf16.msra.mxu0 0
  %217 = vmatprep.mubr.bf16.mxu0 0
  %218 = vmatmul.mubr.bf16.gmra.mrb[0].mxu0 %v111
  %v219 = vpop.f32.mrb[0].mxu0
  %v220 = vadd.f32 %v46, %v219
  %v221 = vpop.f32.mrb[0].mxu0
  %v222 = vadd.f32 %v46, %v221
  %v223 = vpop.f32.mrb[0].mxu0
  %v224 = vadd.f32 %v51, %v223
  %v225 = vpop.f32.mrb[0].mxu0
  %v226 = vadd.f32 %v51, %v225
  %227 = vmatprep.mubr.bf16.mxu0 0
  %228 = vmatmul.mubr.bf16.gmra.mrb[0].mxu0 %v114
  %v229 = vpop.f32.mrb[0].mxu0
  %v230 = vadd.f32 %v56, %v229
  %v231 = vpop.f32.mrb[0].mxu0
  %v232 = vadd.f32 %v56, %v231
  %v233 = vpop.f32.mrb[0].mxu0
  %v234 = vadd.f32 %v61, %v233
  %v235 = vpop.f32.mrb[0].mxu0
  %v236 = vadd.f32 %v61, %v235
  %237 = vdwg.mxu0
  %v238 = vxor.u32 %v167, 2147483648
  %v239 = vxor.u32 %v169, 2147483648
  %v240 = vxor.u32 %v220, 2147483648
  %v241 = vxor.u32 %v222, 2147483648
  %v242 = vxor.u32 %v171, 2147483648
  %v243 = vxor.u32 %v173, 2147483648
  %v244 = vxor.u32 %v224, 2147483648
  %v245 = vxor.u32 %v226, 2147483648
  %v246 = vxor.u32 %v177, 2147483648
  %v247 = vxor.u32 %v179, 2147483648
  %v248 = vxor.u32 %v230, 2147483648
  %v249 = vxor.u32 %v232, 2147483648
  %v250 = vxor.u32 %v181, 2147483648
  %v251 = vxor.u32 %v183, 2147483648
  %v252 = vxor.u32 %v234, 2147483648
  %v253 = vxor.u32 %v236, 2147483648
  %v254 = vmul.f32 %v238, 1.442695
  %v255 = vpow.pop %v254
  %v256 = vmul.f32 %v239, 1.442695
  %v257 = vpow.pop %v256
  %v258 = vmul.f32 %v240, 1.442695
  %v259 = vpow.pop %v258
  %v260 = vmul.f32 %v241, 1.442695
  %v261 = vpow.pop %v260
  %v262 = vmul.f32 %v242, 1.442695
  %v263 = vpow.pop %v262
  %v264 = vmul.f32 %v243, 1.442695
  %v265 = vpow.pop %v264
  %v266 = vmul.f32 %v244, 1.442695
  %v267 = vpow.pop %v266
  %v268 = vmul.f32 %v245, 1.442695
  %v269 = vpow.pop %v268
  %v270 = vmul.f32 %v246, 1.442695
  %v271 = vpow.pop %v270
  %v272 = vmul.f32 %v247, 1.442695
  %v273 = vpow.pop %v272
  %v274 = vmul.f32 %v248, 1.442695
  %v275 = vpow.pop %v274
  %v276 = vmul.f32 %v249, 1.442695
  %v277 = vpow.pop %v276
  %v278 = vmul.f32 %v250, 1.442695
  %v279 = vpow.pop %v278
  %v280 = vmul.f32 %v251, 1.442695
  %v281 = vpow.pop %v280
  %v282 = vmul.f32 %v252, 1.442695
  %v283 = vpow.pop %v282
  %v284 = vmul.f32 %v253, 1.442695
  %v285 = vpow.pop %v284
  %v286 = vadd.f32 %v255, 1.0
  %v287 = vadd.f32 %v257, 1.0
  %v288 = vadd.f32 %v259, 1.0
  %v289 = vadd.f32 %v261, 1.0
  %v290 = vadd.f32 %v263, 1.0
  %v291 = vadd.f32 %v265, 1.0
  %v292 = vadd.f32 %v267, 1.0
  %v293 = vadd.f32 %v269, 1.0
  %v294 = vadd.f32 %v271, 1.0
  %v295 = vadd.f32 %v273, 1.0
  %v296 = vadd.f32 %v275, 1.0
  %v297 = vadd.f32 %v277, 1.0
  %v298 = vadd.f32 %v279, 1.0
  %v299 = vadd.f32 %v281, 1.0
  %v300 = vadd.f32 %v283, 1.0
  %v301 = vadd.f32 %v285, 1.0
  %v302 = vrcp.pop %v286
  %v303 = vmul.f32 1.0, %v302
  %v304 = vrcp.pop %v287
  %v305 = vmul.f32 1.0, %v304
  %v306 = vrcp.pop %v288
  %v307 = vmul.f32 1.0, %v306
  %v308 = vrcp.pop %v289
  %v309 = vmul.f32 1.0, %v308
  %v310 = vrcp.pop %v290
  %v311 = vmul.f32 1.0, %v310
  %v312 = vrcp.pop %v291
  %v313 = vmul.f32 1.0, %v312
  %v314 = vrcp.pop %v292
  %v315 = vmul.f32 1.0, %v314
  %v316 = vrcp.pop %v293
  %v317 = vmul.f32 1.0, %v316
  %v318 = vrcp.pop %v294
  %v319 = vmul.f32 1.0, %v318
  %v320 = vrcp.pop %v295
  %v321 = vmul.f32 1.0, %v320
  %v322 = vrcp.pop %v296
  %v323 = vmul.f32 1.0, %v322
  %v324 = vrcp.pop %v297
  %v325 = vmul.f32 1.0, %v324
  %v326 = vrcp.pop %v298
  %v327 = vmul.f32 1.0, %v326
  %v328 = vrcp.pop %v299
  %v329 = vmul.f32 1.0, %v328
  %v330 = vrcp.pop %v300
  %v331 = vmul.f32 1.0, %v330
  %v332 = vrcp.pop %v301
  %v333 = vmul.f32 1.0, %v332
  %v334 = vmul.f32 %v167, %v303
  %v335 = vmul.f32 %v169, %v305
  %v336 = vmul.f32 %v220, %v307
  %v337 = vmul.f32 %v222, %v309
  %v338 = vmul.f32 %v171, %v311
  %v339 = vmul.f32 %v173, %v313
  %v340 = vmul.f32 %v224, %v315
  %v341 = vmul.f32 %v226, %v317
  %v342 = vmul.f32 %v177, %v319
  %v343 = vmul.f32 %v179, %v321
  %v344 = vmul.f32 %v230, %v323
  %v345 = vmul.f32 %v232, %v325
  %v346 = vmul.f32 %v181, %v327
  %v347 = vmul.f32 %v183, %v329
  %v348 = vmul.f32 %v234, %v331
  %v349 = vmul.f32 %v236, %v333
  %v350 = vld [vmem:[%s3] sm:$0xf]
  %v351 = vld [vmem:[%s3 + $0x4] sm:$0xf]
  %v352 = vld [vmem:[%s3 + $0x8] sm:$0x7]
  %v353 = vpack.c.bf16 %v338, %v334
  %v354 = vpack.c.bf16 %v339, %v335
  %v355 = vpack.c.bf16 %v340, %v336
  %v356 = vpack.c.bf16 %v341, %v337
  %v357 = vpack.c.bf16 %v346, %v342
  %v358 = vpack.c.bf16 %v347, %v343
  %v359 = vpack.c.bf16 %v348, %v344
  %v360 = vpack.c.bf16 %v349, %v345
  %v361 = vld [vmem:[%s4] sm:$0xff]
  %v362 = vld [vmem:[%s4 + $0x8] sm:$0xff]
  %v363 = vld [vmem:[%s4 + $0x10] sm:$0x1f]
  %s364 = scalar_lea.vmem %s4, 24
  %v365 = vld [vmem:[%s364] sm:$0xff]
  %v366 = vld [vmem:[%s364 + $0x8] sm:$0xff]
  %v367 = vld [vmem:[%s364 + $0x10] sm:$0x1f]
  %s368 = scalar_lea.vmem %s4, 48
  %v369 = vld [vmem:[%s368] sm:$0xff]
  %v370 = vld [vmem:[%s368 + $0x8] sm:$0xff]
  %v371 = vld [vmem:[%s368 + $0x10] sm:$0x1f]
  %373 = vset.pattern.permute.xlu0 0
  %374 = vperm.xlu0 %373, %v361
  %v375 = vpop.permute.xlu0 %374
  %378 = vset.pattern.permute.xlu0 0
  %379 = vperm.xlu0 %378, %v362
  %v380 = vpop.permute.xlu0 %379
  %383 = vset.pattern.permute.xlu0 0
  %384 = vperm.xlu0 %383, %v363
  %v385 = vpop.permute.xlu0 %384
  %v390 = vunpack.c.l.b16 %v350
  %v391 = vunpack.c.l.b16 %v351
  %v392 = vunpack.c.l.b16 %v352
  %v393 = vpack.c.b16 %v391, %v390
  %v394 = vpack.c.b16 %v392, %v392
  %vm395 = vcmask 261120
  %v397 = vsel %vm395, %v393, 0
  %v400 = vsel %vm395, %v394, 0
  %402 = vmatprep.subr.bf16.mxu0 %v354
  %403 = vmatpush1.bf16.msra.mxu0 %v353
  %404 = vmatprep.subr.bf16.mxu0 %v358
  %405 = vmatpush1.bf16.msra.mxu0 %v357
  %406 = vmatprep.subr.bf16.mxu0 0
  %407 = vmatpush1.bf16.msra.mxu0 0
  %408 = vmatprep.subr.bf16.mxu0 0
  %409 = vmatpush1.bf16.msra.mxu0 0
  %410 = vmatprep.subr.bf16.mxu0 0
  %411 = vmatpush1.bf16.msra.mxu0 0
  %412 = vmatprep.subr.bf16.mxu0 0
  %413 = vmatpush1.bf16.msra.mxu0 0
  %414 = vmatprep.subr.bf16.mxu0 0
  %415 = vmatpush1.bf16.msra.mxu0 0
  %416 = vmatprep.subr.bf16.mxu0 0
  %417 = vmatpush1.bf16.msra.mxu0 0
  %418 = vmatprep.subr.bf16.mxu0 0
  %419 = vmatpush1.bf16.msra.mxu0 0
  %420 = vmatprep.subr.bf16.mxu0 0
  %421 = vmatpush1.bf16.msra.mxu0 0
  %422 = vmatprep.subr.bf16.mxu0 0
  %423 = vmatpush1.bf16.msra.mxu0 0
  %424 = vmatprep.subr.bf16.mxu0 0
  %425 = vmatpush1.bf16.msra.mxu0 0
  %426 = vmatprep.subr.bf16.mxu0 0
  %427 = vmatpush1.bf16.msra.mxu0 0
  %428 = vmatprep.subr.bf16.mxu0 0
  %429 = vmatpush1.bf16.msra.mxu0 0
  %430 = vmatprep.subr.bf16.mxu0 0
  %431 = vmatpush1.bf16.msra.mxu0 0
  %432 = vmatprep.subr.bf16.mxu0 0
  %433 = vmatpush1.bf16.msra.mxu0 0
  %434 = vmatprep.mubr.bf16.mxu0 0
  %435 = vmatmul.mubr.bf16.gmra.mrb[0].mxu0 %v397
  %v436 = vpop.f32.mrb[0].mxu0
  %v437 = vadd.f32 %v375, %v436
  %v438 = vpop.f32.mrb[0].mxu0
  %v439 = vadd.f32 %v375, %v438
  %v440 = vpop.f32.mrb[0].mxu0
  %v441 = vadd.f32 %v380, %v440
  %v442 = vpop.f32.mrb[0].mxu0
  %v443 = vadd.f32 %v380, %v442
  %444 = vmatprep.mubr.bf16.mxu0 0
  %445 = vmatmul.mubr.bf16.gmra.mrb[0].mxu0 %v400
  %v446 = vpop.f32.mrb[0].mxu0
  %v447 = vadd.f32 %v385, %v446
  %v448 = vpop.f32.mrb[0].mxu0
  %v449 = vadd.f32 %v385, %v448
  %v450 = vpop.f32.mrb[0].mxu0
  %v451 = vpop.f32.mrb[0].mxu0
  %452 = vdwg.mxu0
  %453 = vmatprep.subr.bf16.mxu0 %v356
  %454 = vmatpush1.bf16.msra.mxu0 %v355
  %455 = vmatprep.subr.bf16.mxu0 %v360
  %456 = vmatpush1.bf16.msra.mxu0 %v359
  %457 = vmatprep.subr.bf16.mxu0 0
  %458 = vmatpush1.bf16.msra.mxu0 0
  %459 = vmatprep.subr.bf16.mxu0 0
  %460 = vmatpush1.bf16.msra.mxu0 0
  %461 = vmatprep.subr.bf16.mxu0 0
  %462 = vmatpush1.bf16.msra.mxu0 0
  %463 = vmatprep.subr.bf16.mxu0 0
  %464 = vmatpush1.bf16.msra.mxu0 0
  %465 = vmatprep.subr.bf16.mxu0 0
  %466 = vmatpush1.bf16.msra.mxu0 0
  %467 = vmatprep.subr.bf16.mxu0 0
  %468 = vmatpush1.bf16.msra.mxu0 0
  %469 = vmatprep.subr.bf16.mxu0 0
  %470 = vmatpush1.bf16.msra.mxu0 0
  %471 = vmatprep.subr.bf16.mxu0 0
  %472 = vmatpush1.bf16.msra.mxu0 0
  %473 = vmatprep.subr.bf16.mxu0 0
  %474 = vmatpush1.bf16.msra.mxu0 0
  %475 = vmatprep.subr.bf16.mxu0 0
  %476 = vmatpush1.bf16.msra.mxu0 0
  %477 = vmatprep.subr.bf16.mxu0 0
  %478 = vmatpush1.bf16.msra.mxu0 0
  %479 = vmatprep.subr.bf16.mxu0 0
  %480 = vmatpush1.bf16.msra.mxu0 0
  %481 = vmatprep.subr.bf16.mxu0 0
  %482 = vmatpush1.bf16.msra.mxu0 0
  %483 = vmatprep.subr.bf16.mxu0 0
  %484 = vmatpush1.bf16.msra.mxu0 0
  %485 = vmatprep.mubr.bf16.mxu0 0
  %486 = vmatmul.mubr.bf16.gmra.mrb[0].mxu0 %v397
  %v487 = vpop.f32.mrb[0].mxu0
  %v488 = vadd.f32 %v375, %v487
  %v489 = vpop.f32.mrb[0].mxu0
  %v490 = vadd.f32 %v375, %v489
  %v491 = vpop.f32.mrb[0].mxu0
  %v492 = vadd.f32 %v380, %v491
  %v493 = vpop.f32.mrb[0].mxu0
  %v494 = vadd.f32 %v380, %v493
  %495 = vmatprep.mubr.bf16.mxu0 0
  %496 = vmatmul.mubr.bf16.gmra.mrb[0].mxu0 %v400
  %v497 = vpop.f32.mrb[0].mxu0
  %v498 = vadd.f32 %v385, %v497
  %v499 = vpop.f32.mrb[0].mxu0
  %v500 = vadd.f32 %v385, %v499
  %v501 = vpop.f32.mrb[0].mxu0
  %v502 = vpop.f32.mrb[0].mxu0
  %503 = vdwg.mxu0
  %v504 = vxor.u32 %v437, 2147483648
  %v505 = vxor.u32 %v439, 2147483648
  %v506 = vxor.u32 %v488, 2147483648
  %v507 = vxor.u32 %v490, 2147483648
  %v508 = vxor.u32 %v441, 2147483648
  %v509 = vxor.u32 %v443, 2147483648
  %v510 = vxor.u32 %v492, 2147483648
  %v511 = vxor.u32 %v494, 2147483648
  %v512 = vxor.u32 %v447, 2147483648
  %v513 = vxor.u32 %v449, 2147483648
  %v514 = vxor.u32 %v498, 2147483648
  %v515 = vxor.u32 %v500, 2147483648
  %v516 = vmul.f32 %v504, 1.442695
  %v517 = vpow.pop %v516
  %v518 = vmul.f32 %v505, 1.442695
  %v519 = vpow.pop %v518
  %v520 = vmul.f32 %v506, 1.442695
  %v521 = vpow.pop %v520
  %v522 = vmul.f32 %v507, 1.442695
  %v523 = vpow.pop %v522
  %v524 = vmul.f32 %v508, 1.442695
  %v525 = vpow.pop %v524
  %v526 = vmul.f32 %v509, 1.442695
  %v527 = vpow.pop %v526
  %v528 = vmul.f32 %v510, 1.442695
  %v529 = vpow.pop %v528
  %v530 = vmul.f32 %v511, 1.442695
  %v531 = vpow.pop %v530
  %v532 = vmul.f32 %v512, 1.442695
  %v533 = vpow.pop %v532
  %v534 = vmul.f32 %v513, 1.442695
  %v535 = vpow.pop %v534
  %v536 = vmul.f32 %v514, 1.442695
  %v537 = vpow.pop %v536
  %v538 = vmul.f32 %v515, 1.442695
  %v539 = vpow.pop %v538
  %v540 = vadd.f32 %v517, 1.0
  %v541 = vadd.f32 %v519, 1.0
  %v542 = vadd.f32 %v521, 1.0
  %v543 = vadd.f32 %v523, 1.0
  %v544 = vadd.f32 %v525, 1.0
  %v545 = vadd.f32 %v527, 1.0
  %v546 = vadd.f32 %v529, 1.0
  %v547 = vadd.f32 %v531, 1.0
  %v548 = vadd.f32 %v533, 1.0
  %v549 = vadd.f32 %v535, 1.0
  %v550 = vadd.f32 %v537, 1.0
  %v551 = vadd.f32 %v539, 1.0
  %v552 = vrcp.pop %v540
  %v553 = vmul.f32 1.0, %v552
  %v554 = vrcp.pop %v541
  %v555 = vmul.f32 1.0, %v554
  %v556 = vrcp.pop %v542
  %v557 = vmul.f32 1.0, %v556
  %v558 = vrcp.pop %v543
  %v559 = vmul.f32 1.0, %v558
  %v560 = vrcp.pop %v544
  %v561 = vmul.f32 1.0, %v560
  %v562 = vrcp.pop %v545
  %v563 = vmul.f32 1.0, %v562
  %v564 = vrcp.pop %v546
  %v565 = vmul.f32 1.0, %v564
  %v566 = vrcp.pop %v547
  %v567 = vmul.f32 1.0, %v566
  %v568 = vrcp.pop %v548
  %v569 = vmul.f32 1.0, %v568
  %v570 = vrcp.pop %v549
  %v571 = vmul.f32 1.0, %v570
  %v572 = vrcp.pop %v550
  %v573 = vmul.f32 1.0, %v572
  %v574 = vrcp.pop %v551
  %v575 = vmul.f32 1.0, %v574
  %v576 = vadd.f32 %v553, %v553
  %v577 = vadd.f32 %v555, %v555
  %v578 = vadd.f32 %v557, %v557
  %v579 = vadd.f32 %v559, %v559
  %v580 = vadd.f32 %v561, %v561
  %v581 = vadd.f32 %v563, %v563
  %v582 = vadd.f32 %v565, %v565
  %v583 = vadd.f32 %v567, %v567
  %v584 = vadd.f32 %v569, %v569
  %v585 = vadd.f32 %v571, %v571
  %v586 = vadd.f32 %v573, %v573
  %v587 = vadd.f32 %v575, %v575
  %v588 = vsub.f32 %v576, 0.5
  %v589 = vsub.f32 %v577, 0.5
  %v590 = vsub.f32 %v578, 0.5
  %v591 = vsub.f32 %v579, 0.5
  %v592 = vsub.f32 %v580, 0.5
  %v593 = vsub.f32 %v581, 0.5
  %v594 = vsub.f32 %v582, 0.5
  %v595 = vsub.f32 %v583, 0.5
  %v596 = vsub.f32 %v584, 0.5
  %v597 = vsub.f32 %v585, 0.5
  %v598 = vsub.f32 %v586, 0.5
  %v599 = vsub.f32 %v587, 0.5
  %v600 = vld [vmem:[%s5] sm:$0xff]
  %v601 = vld [vmem:[%s5 + $0x8] sm:$0xff]
  %v602 = vld [vmem:[%s5 + $0x10] sm:$0xff]
  %v603 = vld [vmem:[%s5 + $0x18] sm:$0xff]
  %v604 = vld [vmem:[%s5 + $0x20] sm:$0xff]
  %v605 = vld [vmem:[%s5 + $0x28] sm:$0xff]
  %v606 = vld [vmem:[%s5 + $0x30] sm:$0xff]
  %v607 = vld [vmem:[%s5 + $0x38] sm:$0xff]
  %v608 = vld [vmem:[%s5 + $0x40] sm:$0x1f]
  %v609 = vld [vmem:[%s5 + $0x48] sm:$0x1f]
  %v610 = vld [vmem:[%s5 + $0x50] sm:$0x1f]
  %v611 = vld [vmem:[%s5 + $0x58] sm:$0x1f]
  %v612 = vadd.f32 %v588, %v600
  %v613 = vadd.f32 %v589, %v601
  %v614 = vadd.f32 %v590, %v602
  %v615 = vadd.f32 %v591, %v603
  %v616 = vadd.f32 %v592, %v604
  %v617 = vadd.f32 %v593, %v605
  %v618 = vadd.f32 %v594, %v606
  %v619 = vadd.f32 %v595, %v607
  %v620 = vadd.f32 %v596, %v608
  %v621 = vadd.f32 %v597, %v609
  %v622 = vadd.f32 %v598, %v610
  %v623 = vadd.f32 %v599, %v611
  %v624 = vmul.f32 %v612, 8.0
  %v625 = vmul.f32 %v613, 8.0
  %v626 = vmul.f32 %v614, 8.0
  %v627 = vmul.f32 %v615, 8.0
  %v628 = vmul.f32 %v616, 8.0
  %v629 = vmul.f32 %v617, 8.0
  %v630 = vmul.f32 %v618, 8.0
  %v631 = vmul.f32 %v619, 8.0
  %v632 = vmul.f32 %v620, 8.0
  %v633 = vmul.f32 %v621, 8.0
  %v634 = vmul.f32 %v622, 8.0
  %v635 = vmul.f32 %v623, 8.0
  %v636 = vmul.f32 %v576, %v576
  %v637 = vmul.f32 %v577, %v577
  %v638 = vmul.f32 %v578, %v578
  %v639 = vmul.f32 %v579, %v579
  %v640 = vmul.f32 %v580, %v580
  %v641 = vmul.f32 %v581, %v581
  %v642 = vmul.f32 %v582, %v582
  %v643 = vmul.f32 %v583, %v583
  %v644 = vmul.f32 %v584, %v584
  %v645 = vmul.f32 %v585, %v585
  %v646 = vmul.f32 %v586, %v586
  %v647 = vmul.f32 %v587, %v587
  %649 = vset.pattern.permute.xlu0 0
  %650 = vperm.xlu0 %649, %v365
  %v651 = vpop.permute.xlu0 %650
  %654 = vset.pattern.permute.xlu0 0
  %655 = vperm.xlu0 %654, %v366
  %v656 = vpop.permute.xlu0 %655
  %659 = vset.pattern.permute.xlu0 0
  %660 = vperm.xlu0 %659, %v367
  %v661 = vpop.permute.xlu0 %660
  %v663 = vmul.f32 %v636, %v651
  %v664 = vmul.f32 %v637, %v651
  %v665 = vmul.f32 %v638, %v651
  %v666 = vmul.f32 %v639, %v651
  %v667 = vmul.f32 %v640, %v656
  %v668 = vmul.f32 %v641, %v656
  %v669 = vmul.f32 %v642, %v656
  %v670 = vmul.f32 %v643, %v656
  %v671 = vmul.f32 %v644, %v661
  %v672 = vmul.f32 %v645, %v661
  %v673 = vmul.f32 %v646, %v661
  %v674 = vmul.f32 %v647, %v661
  %vm675 = vcmp.lt.f32.partialorder %v369, 0.5
  %vm676 = vcmp.lt.f32.partialorder %v370, 0.5
  %vm677 = vcmp.lt.f32.partialorder %v371, 0.5
  %vm678 = vcmp.lt.f32.partialorder %v369, 1.5
  %vm679 = vcmp.lt.f32.partialorder %v370, 1.5
  %vm680 = vcmp.lt.f32.partialorder %v371, 1.5
  %v681 = vsel %vm678, 1, 0
  %v682 = vsel %vm679, 1, 0
  %v683 = vsel %vm680, 1, 0
  %684 = vset.pattern.permute.xlu0 0
  %685 = vperm.xlu0 %684, %v681
  %v686 = vpop.permute.xlu0 %685
  %687 = vset.pattern.permute.xlu0 0
  %688 = vperm.xlu0 %687, %v682
  %v689 = vpop.permute.xlu0 %688
  %690 = vset.pattern.permute.xlu0 0
  %691 = vperm.xlu0 %690, %v683
  %v692 = vpop.permute.xlu0 %691
  %vm693 = vcmp.eq.s32.totalorder %v686, 1
  %vm694 = vcmp.eq.s32.totalorder %v689, 1
  %vm695 = vcmp.eq.s32.totalorder %v692, 1
  %v696 = vsel %vm693, %v663, %v553
  %v697 = vsel %vm693, %v664, %v555
  %v698 = vsel %vm693, %v665, %v557
  %v699 = vsel %vm693, %v666, %v559
  %v700 = vsel %vm694, %v667, %v561
  %v701 = vsel %vm694, %v668, %v563
  %v702 = vsel %vm694, %v669, %v565
  %v703 = vsel %vm694, %v670, %v567
  %v704 = vsel %vm695, %v671, %v569
  %v705 = vsel %vm695, %v672, %v571
  %v706 = vsel %vm695, %v673, %v573
  %v707 = vsel %vm695, %v674, %v575
  %v708 = vsel %vm675, 1, 0
  %v709 = vsel %vm676, 1, 0
  %v710 = vsel %vm677, 1, 0
  %711 = vset.pattern.permute.xlu0 0
  %712 = vperm.xlu0 %711, %v708
  %v713 = vpop.permute.xlu0 %712
  %714 = vset.pattern.permute.xlu0 0
  %715 = vperm.xlu0 %714, %v709
  %v716 = vpop.permute.xlu0 %715
  %717 = vset.pattern.permute.xlu0 0
  %718 = vperm.xlu0 %717, %v710
  %v719 = vpop.permute.xlu0 %718
  %vm720 = vcmp.eq.s32.totalorder %v713, 1
  %vm721 = vcmp.eq.s32.totalorder %v716, 1
  %vm722 = vcmp.eq.s32.totalorder %v719, 1
  %v723 = vsel %vm720, %v624, %v696
  %v724 = vsel %vm720, %v625, %v697
  %v725 = vsel %vm720, %v626, %v698
  %v726 = vsel %vm720, %v627, %v699
  %v727 = vsel %vm721, %v628, %v700
  %v728 = vsel %vm721, %v629, %v701
  %v729 = vsel %vm721, %v630, %v702
  %v730 = vsel %vm721, %v631, %v703
  %v731 = vsel %vm722, %v632, %v704
  %v732 = vsel %vm722, %v633, %v705
  %v733 = vsel %vm722, %v634, %v706
  %v734 = vsel %vm722, %v635, %v707
  %v735 = vld [vmem:[%s6] sm:$0xff]
  %v736 = vld [vmem:[%s6 + $0x8] sm:$0xff]
  %v737 = vld [vmem:[%s6 + $0x10] sm:$0xff]
  %v738 = vld [vmem:[%s6 + $0x18] sm:$0xff]
  %v739 = vld [vmem:[%s6 + $0x20] sm:$0xff]
  %v740 = vld [vmem:[%s6 + $0x28] sm:$0xff]
  %v741 = vld [vmem:[%s6 + $0x30] sm:$0xff]
  %v742 = vld [vmem:[%s6 + $0x38] sm:$0xff]
  %v743 = vld [vmem:[%s6 + $0x40] sm:$0x1f]
  %v744 = vld [vmem:[%s6 + $0x48] sm:$0x1f]
  %v745 = vld [vmem:[%s6 + $0x50] sm:$0x1f]
  %v746 = vld [vmem:[%s6 + $0x58] sm:$0x1f]
  %vm747 = vcmp.ge.s32.totalorder %v735, 429496729
  %vm748 = vcmp.ge.s32.totalorder %v736, 429496729
  %vm749 = vcmp.ge.s32.totalorder %v737, 429496729
  %vm750 = vcmp.ge.s32.totalorder %v738, 429496729
  %vm751 = vcmp.ge.s32.totalorder %v739, 429496729
  %vm752 = vcmp.ge.s32.totalorder %v740, 429496729
  %vm753 = vcmp.ge.s32.totalorder %v741, 429496729
  %vm754 = vcmp.ge.s32.totalorder %v742, 429496729
  %vm755 = vcmp.ge.s32.totalorder %v743, 429496729
  %vm756 = vcmp.ge.s32.totalorder %v744, 429496729
  %vm757 = vcmp.ge.s32.totalorder %v745, 429496729
  %vm758 = vcmp.ge.s32.totalorder %v746, 429496729
  %v759 = vsel %vm747, 1.25, 0.0
  %v760 = vsel %vm748, 1.25, 0.0
  %v761 = vsel %vm749, 1.25, 0.0
  %v762 = vsel %vm750, 1.25, 0.0
  %v763 = vsel %vm751, 1.25, 0.0
  %v764 = vsel %vm752, 1.25, 0.0
  %v765 = vsel %vm753, 1.25, 0.0
  %v766 = vsel %vm754, 1.25, 0.0
  %v767 = vsel %vm755, 1.25, 0.0
  %v768 = vsel %vm756, 1.25, 0.0
  %v769 = vsel %vm757, 1.25, 0.0
  %v770 = vsel %vm758, 1.25, 0.0
  %v771 = vmul.f32 %v723, %v759
  %v772 = vmul.f32 %v724, %v760
  %v773 = vmul.f32 %v725, %v761
  %v774 = vmul.f32 %v726, %v762
  %v775 = vmul.f32 %v727, %v763
  %v776 = vmul.f32 %v728, %v764
  %v777 = vmul.f32 %v729, %v765
  %v778 = vmul.f32 %v730, %v766
  %v779 = vmul.f32 %v731, %v767
  %v780 = vmul.f32 %v732, %v768
  %v781 = vmul.f32 %v733, %v769
  %v782 = vmul.f32 %v734, %v770
  %783 = vst [vmem:[%s7] sm:$0xff] %v771
  %784 = vst [vmem:[%s7 + $0x8] sm:$0xff] %v772
  %785 = vst [vmem:[%s7 + $0x10] sm:$0xff] %v773
  %786 = vst [vmem:[%s7 + $0x18] sm:$0xff] %v774
  %787 = vst [vmem:[%s7 + $0x20] sm:$0xff] %v775
  %788 = vst [vmem:[%s7 + $0x28] sm:$0xff] %v776
  %789 = vst [vmem:[%s7 + $0x30] sm:$0xff] %v777
  %790 = vst [vmem:[%s7 + $0x38] sm:$0xff] %v778
  %791 = vst [vmem:[%s7 + $0x40] sm:$0x1f] %v779
  %792 = vst [vmem:[%s7 + $0x48] sm:$0x1f] %v780
  %793 = vst [vmem:[%s7 + $0x50] sm:$0x1f] %v781
  %794 = vst [vmem:[%s7 + $0x58] sm:$0x1f] %v782
  // Predicated region
  $region30: #{lesion_detection_forward.1} parent=0 // pred_check
    _
  $region31: #{lesion_detection_forward.1} parent=0 // pred_check_branch
    %796 = sbr.rel (0) target = $region33
  $region32: #{lesion_detection_forward.1} parent=0 // pred_region
    _
  $region33: #{lesion_detection_forward.1} parent=0 // pred_fallthru
    _
  // Predicated region
  $region34: #{lesion_detection_forward.1} parent=0 // pred_check
    _
  $region35: #{lesion_detection_forward.1} parent=0 // pred_check_branch
    %798 = sbr.rel (0) target = $region37
  $region36: #{lesion_detection_forward.1} parent=0 // pred_region
    _
  $region37: #{lesion_detection_forward.1} parent=0 // pred_fallthru
    _

</llo_original>
